<compile_context>
chip_gen: v5e
topology: v5e:2x2
jax: 0.10.0
libtpu: 0.0.40
codegen_flags: <defaults>
</compile_context>

<pallas_src>
import jax
import jax.numpy as jnp
from jax.experimental import pallas as pl
from jax.experimental.pallas import tpu as pltpu


_LANE = 512                      # lane-dense last dim (multiple of 128 -> unmasked vst)
_TARGET_TILE_BYTES = 4 << 20     # ~4 MiB per buffer: step DMA time >> 0.35 us step overhead
_VMEM_LIMIT_BYTES = 32 << 20     # 6 live buffers * 4 MiB = 24 MiB + headroom; OK on v5e/v6e/v7x
_PALLAS_MIN_BYTES = 32 << 20     # below this a fused XLA elementwise op is strictly better


def _fusion_kernel(h_ref, f_ref, o_ref):
    # Pure elementwise multiply on the current VMEM tile (VPU). HBM-bandwidth bound.
    o_ref[...] = h_ref[...] * f_ref[...]


def _fusion_2d(h2: jax.Array, f2: jax.Array) -> jax.Array:
    """Pallas elementwise multiply on a (rows, 512) lane-dense slab."""
    rows, lane = h2.shape
    itemsize = jnp.dtype(h2.dtype).itemsize

    # Sub-32-bit dtypes pack along sublanes: block rows must be a multiple of the packed
    # sublane count (8 f32, 16 bf16, 32 int8/fp8) unless the block spans the full row dim.
    sub_mult = max(8, 32 // itemsize)
    tr = (_TARGET_TILE_BYTES // (lane * itemsize)) // sub_mult * sub_mult
    tr = max(tr, sub_mult)
    if rows <= tr:
        tr = rows                         # single full-extent block (always a legal shape)
    grid = (pl.cdiv(rows, tr),)           # last block may be partial: Pallas masks it

    n_elems = rows * lane
    return pl.pallas_call(
        _fusion_kernel,
        out_shape=jax.ShapeDtypeStruct((rows, lane), h2.dtype),
        grid=grid,
        in_specs=[
            pl.BlockSpec((tr, lane), lambda i: (i, 0)),
            pl.BlockSpec((tr, lane), lambda i: (i, 0)),
        ],
        out_specs=pl.BlockSpec((tr, lane), lambda i: (i, 0)),
        compiler_params=pltpu.CompilerParams(
            # Independent row tiles: shards across both TensorCores on v7x; near-neutral
            # on single-TC v5e/v6e. (If an xprof trace shows only one TC active on v7x,
            # switch this axis to pltpu.CORE_PARALLEL.)
            dimension_semantics=("parallel",),
            vmem_limit_bytes=_VMEM_LIMIT_BYTES,
        ),
        cost_estimate=pl.CostEstimate(
            flops=n_elems,
            transcendentals=0,
            bytes_accessed=3 * n_elems * itemsize,
        ),
    )(h2, f2)


def elementwise_fusion(H: jax.Array, f: jax.Array, *, force_pallas: bool = False) -> jax.Array:
    assert H.shape == f.shape, "H and f must have the same shape"
    assert H.dtype == f.dtype, "H and f must have the same dtype"

    orig_shape = H.shape
    total = H.size
    itemsize = jnp.dtype(H.dtype).itemsize

    if total == 0:
        return H * f

    # A standalone elementwise multiply hits the same HBM roofline as XLA's fused op but
    # adds launch/grid-step overhead; only route big tensors (or forced demos) to Pallas.
    # The real win from this kernel is when fused into a producer kernel's epilogue.
    if not force_pallas and total * itemsize < _PALLAS_MIN_BYTES:
        return H * f

    # Contiguous reshape to 1-D is a bitcast: no HBM traffic.
    h_flat = H.reshape(-1)
    f_flat = f.reshape(-1)

    main = (total // _LANE) * _LANE
    tail = total - main

    if main == 0:
        # Fewer than one lane row: a kernel launch is pure overhead.
        return H * f

    if tail == 0:
        # Aligned path: zero wrapper-side copies.
        out_flat = _fusion_2d(h_flat.reshape(-1, _LANE),
                              f_flat.reshape(-1, _LANE)).reshape(-1)
    else:
        # Misaligned path: kernel over the 512-aligned prefix, plain XLA multiply on the
        # <512-element ragged tail. Avoids materializing padded copies of both full
        # inputs and re-slicing the full output.
        out_main = _fusion_2d(h_flat[:main].reshape(-1, _LANE),
                              f_flat[:main].reshape(-1, _LANE)).reshape(-1)
        out_tail = h_flat[main:] * f_flat[main:]
        out_flat = jnp.concatenate([out_main, out_tail])

    return out_flat.reshape(orig_shape)


if __name__ == "__main__":
    key = jax.random.PRNGKey(0)
    k1, k2, k3, k4, k5, k6 = jax.random.split(key, 6)

    # Small NCHW feature-map fusion shape; force the Pallas path so the kernel runs.
    shape = (2, 4, 16, 16)
    H = jax.random.normal(k1, shape, dtype=jnp.float32)
    f = jax.random.normal(k2, shape, dtype=jnp.float32)
    out = jax.block_until_ready(elementwise_fusion(H, f, force_pallas=True))
    ref = H * f
    assert out.shape == ref.shape and out.dtype == ref.dtype
    assert jnp.allclose(out, ref, atol=1e-6, rtol=1e-6)

    # Misaligned total (not a multiple of 512): exercises the main-kernel + XLA-tail path.
    shape_odd = (3, 5, 7, 11)  # 1155 elements -> main=1024, tail=131
    H3 = jax.random.normal(k3, shape_odd, dtype=jnp.float32)
    f3 = jax.random.normal(k4, shape_odd, dtype=jnp.float32)
    out3 = jax.block_until_ready(elementwise_fusion(H3, f3, force_pallas=True))
    ref3 = H3 * f3
    assert out3.shape == ref3.shape
    assert jnp.allclose(out3, ref3, atol=1e-6, rtol=1e-6)

    # Multi-tile pipelined path: 2_097_152 f32 elements -> 4096 rows -> 2 grid steps
    # with 4 MiB (2048 x 512) buffers.
    shape2 = (8, 16, 128, 128)
    H2 = jax.random.normal(k5, shape2, dtype=jnp.float32)
    f2 = jax.random.normal(k6, shape2, dtype=jnp.float32)
    out2 = jax.block_until_ready(elementwise_fusion(H2, f2, force_pallas=True))
    ref2 = H2 * f2
    assert out2.shape == ref2.shape
    assert jnp.allclose(out2, ref2, atol=1e-6, rtol=1e-6)

    # bf16 coverage (sublane multiple = 16; tiny shape takes the full-extent block path).
    Hb = H.astype(jnp.bfloat16)
    fb = f.astype(jnp.bfloat16)
    outb = jax.block_until_ready(elementwise_fusion(Hb, fb, force_pallas=True))
    refb = Hb * fb
    assert outb.dtype == jnp.bfloat16
    assert jnp.allclose(outb.astype(jnp.float32), refb.astype(jnp.float32),
                        atol=1e-2, rtol=1e-2)

    print("KERNEL_OK")
</pallas_src>

<mosaic_0001>
module attributes {stable_mosaic.version = 11 : i64} {
  func.func @_fusion_kernel(%arg0: i32, %arg1: memref<4x512xf32, #tpu.memory_space<vmem>>, %arg2: memref<4x512xf32, #tpu.memory_space<vmem>>, %arg3: memref<4x512xf32, #tpu.memory_space<vmem>>) attributes {dimension_semantics = [#tpu.dimension_semantics<parallel>], iteration_bounds = array<i64: 1>, scalar_prefetch = 0 : i64, scratch_operands = 0 : i64, tpu.core_type = #tpu.core_type<tc>, window_params = [{transform_indices = @transform_0, window_bounds = array<i64: 4, 512>}, {transform_indices = @transform_1, window_bounds = array<i64: 4, 512>}, {transform_indices = @transform_2, window_bounds = array<i64: 4, 512>}]} {
    %c0 = arith.constant 0 : index
    %c0_0 = arith.constant 0 : index
    %0 = vector.load %arg1[%c0, %c0_0] : memref<4x512xf32, #tpu.memory_space<vmem>>, vector<4x512xf32>
    %c0_1 = arith.constant 0 : index
    %c0_2 = arith.constant 0 : index
    %1 = vector.load %arg2[%c0_1, %c0_2] : memref<4x512xf32, #tpu.memory_space<vmem>>, vector<4x512xf32>
    %2 = arith.mulf %0, %1 : vector<4x512xf32>
    %c0_3 = arith.constant 0 : index
    %c0_4 = arith.constant 0 : index
    %3 = vector.load %arg3[%c0_3, %c0_4] : memref<4x512xf32, #tpu.memory_space<vmem>>, vector<4x512xf32>
    tpu.vector_store %arg3[%c0_3, %c0_4], %2 {strides = array<i32>} : memref<4x512xf32, #tpu.memory_space<vmem>>, vector<4x512xf32>,
    return
  }
  func.func @transform_0(%arg0: i32) -> (i32, i32) {
    %c0_i32 = arith.constant 0 : i32
    %c0_i32_0 = arith.constant 0 : i32
    return %arg0, %c0_i32 : i32, i32
  }
  func.func @transform_1(%arg0: i32) -> (i32, i32) {
    %c0_i32 = arith.constant 0 : i32
    %c0_i32_0 = arith.constant 0 : i32
    return %arg0, %c0_i32 : i32, i32
  }
  func.func @transform_2(%arg0: i32) -> (i32, i32) {
    %c0_i32 = arith.constant 0 : i32
    %c0_i32_0 = arith.constant 0 : i32
    return %arg0, %c0_i32 : i32, i32
  }
}

</mosaic_0001>

<llo_original>
// kernel: tpu_custom_call.1
$region0: #{tpu_custom_call.1}
  #allocation0 [shape = 'u32[]', space=smem, size = 0x4, offset = 0x4, fixed_abs, tag = 'smem constant byte address 0x4 - core index']
  #allocation1 [shape = 'u32[72,128]{1,0:T(1,128)}', space=vmem, size = 0x9000, scoped, tag = 'internal scratch']
  %s0 = inlined_call_operand.hbm [shape: f32[4,512], index: 0, kind: input, shape index: {}]
  %s1 = inlined_call_operand.hbm [shape: f32[4,512], index: 1, kind: input, shape index: {}]
  %s2 = inlined_call_operand.hbm [shape: f32[4,512], index: 2, kind: output, shape index: {}]
  %s3 = sld [smem:[#allocation0]]
  $region26: #{tpu_custom_call.1} parent=0
    _
  %s5 = ssub.s32 1, %s3
  %s6 = scalar_select 0, %s5, %s3
  $region1: #{tpu_custom_call.1} parent=0
    #allocation2 [shape = 'u8[8192]{0}', space=vmem, size = 0x2000, scoped, tag = 'input window, operand 0, single buffered']
    #allocation3 [shape = 's32[1]{0}', space=sflag, size = 0x4, scoped, tag = 'scoped memory for tpu_custom_call.1']
    #allocation4 [shape = 's32[1]{0}', space=sflag, size = 0x4, scoped, tag = 'scoped memory for tpu_custom_call.1']
    #allocation5 [shape = 'u8[8192]{0}', space=vmem, size = 0x2000, scoped, tag = 'input window, operand 1, single buffered']
    #allocation6 [shape = 's32[1]{0}', space=sflag, size = 0x4, scoped, tag = 'scoped memory for tpu_custom_call.1']
    #allocation7 [shape = 'u8[8192]{0}', space=vmem, size = 0x2000, scoped, tag = 'output window, operand 0, single buffered']
    %7 = vsyncpa [#allocation3], 0
    %8 = vsyncpa [#allocation6], 0
    %9 = vsyncpa [#allocation4], 0
    // Predicated region
    $region2: #{tpu_custom_call.1} parent=1 // pred_check
      _
    $region3: #{tpu_custom_call.1} parent=1 // pred_check_branch
      %11 = sbr.rel (0) target = $region5
    $region4: #{tpu_custom_call.1} parent=1 // pred_region
      %13 = vsyncadd [#allocation3], 0
      %s15 = sshll.u32 %s0, 4
      %s16 = int_to_ptr.hbm [resolvable:$true] %s15
      %s17 = sshll.u32 [#allocation2], 4
      %s18 = int_to_ptr.vmem [resolvable:$true] %s17
      %20 = dma.hbm_to_vmem [thread:$0]  %s16, 256, %s18, [#allocation3]
    $region5: #{tpu_custom_call.1} parent=1 // pred_fallthru
      _
    // Predicated region
    $region6: #{tpu_custom_call.1} parent=1 // pred_check
      _
    $region7: #{tpu_custom_call.1} parent=1 // pred_check_branch
      %22 = sbr.rel (0) target = $region9
    $region8: #{tpu_custom_call.1} parent=1 // pred_region
      %24 = vsyncadd [#allocation6], 0
      %s26 = sshll.u32 %s1, 4
      %s27 = int_to_ptr.hbm [resolvable:$true] %s26
      %s28 = sshll.u32 [#allocation5], 4
      %s29 = int_to_ptr.vmem [resolvable:$true] %s28
      %31 = dma.hbm_to_vmem [thread:$0]  %s27, 256, %s29, [#allocation6]
    $region9: #{tpu_custom_call.1} parent=1 // pred_fallthru
      _
    // Predicated region
    $region10: #{tpu_custom_call.1} parent=1 // pred_check
      _
    $region11: #{tpu_custom_call.1} parent=1 // pred_check_branch
      %33 = sbr.rel (0) target = $region13
    $region12: #{tpu_custom_call.1} parent=1 // pred_region
      %35 = dma.done [#allocation3], 256
    $region13: #{tpu_custom_call.1} parent=1 // pred_fallthru
      _
    // Predicated region
    $region14: #{tpu_custom_call.1} parent=1 // pred_check
      _
    $region15: #{tpu_custom_call.1} parent=1 // pred_check_branch
      %37 = sbr.rel (0) target = $region17
    $region16: #{tpu_custom_call.1} parent=1 // pred_region
      %39 = dma.done [#allocation6], 256
    $region17: #{tpu_custom_call.1} parent=1 // pred_fallthru
      _
    %v40 = vld [vmem:[#allocation2] sm:$0xff]
    %v41 = vld [vmem:[#allocation2 + $0x8] sm:$0xff]
    %v42 = vld [vmem:[#allocation5] sm:$0xff]
    %v43 = vld [vmem:[#allocation5 + $0x8] sm:$0xff]
    %v44 = vmul.f32 %v40, %v42
    %v45 = vmul.f32 %v41, %v43
    %46 = vst [vmem:[#allocation7] sm:$0xff] %v44
    %47 = vst [vmem:[#allocation7 + $0x8] sm:$0xff] %v45
    // Predicated region
    $region18: #{tpu_custom_call.1} parent=1 // pred_check
      _
    $region19: #{tpu_custom_call.1} parent=1 // pred_check_branch
      %49 = sbr.rel (0) target = $region21
    $region20: #{tpu_custom_call.1} parent=1 // pred_region
      %51 = vsyncadd [#allocation4], 0
      %s53 = sshll.u32 [#allocation7], 4
      %s54 = int_to_ptr.vmem [resolvable:$true] %s53
      %s55 = sshll.u32 %s2, 4
      %s56 = int_to_ptr.hbm [resolvable:$true] %s55
      %58 = dma.vmem_to_hbm [thread:$0]  %s54, 256, %s56, [#allocation4]
    $region21: #{tpu_custom_call.1} parent=1 // pred_fallthru
      _
    // Predicated region
    $region22: #{tpu_custom_call.1} parent=1 // pred_check
      _
    $region23: #{tpu_custom_call.1} parent=1 // pred_check_branch
      %60 = sbr.rel (0) target = $region25
    $region24: #{tpu_custom_call.1} parent=1 // pred_region
      %62 = dma.done [#allocation4], 256
    $region25: #{tpu_custom_call.1} parent=1 // pred_fallthru
      _
    %63 = vsyncpa [#allocation3], 1
    %64 = vsyncpa [#allocation6], 1
    %65 = vsyncpa [#allocation4], 1

</llo_original>
